<compile_context>
chip_gen: v7x
topology: tpu7x:2x2x1
jax: 0.10.0
libtpu: 0.0.40
codegen_flags: <defaults>
</compile_context>

<pallas_src>
import functools

import jax
import jax.numpy as jnp
from jax.experimental import pallas as pl
from jax.experimental.pallas import tpu as pltpu


# ----------------------------------------------------------------------------
# Kernels
# ----------------------------------------------------------------------------

def se_kernel(x_ref, w1_ref, w2_ref, o_ref, *, inv_hw):
    """Single-pass SE: pool + FC1 + relu + FC2 + sigmoid + rescale on one block.

    x_ref: (BT, C, HW)   w1_ref: (hidden, C)   w2_ref: (C, hidden)
    """
    x = x_ref[...]                                                    # native dtype

    # Global average pool: f32 accumulation over the (unpadded) spatial axis.
    pooled = jnp.sum(x, axis=-1, dtype=jnp.float32) * inv_hw          # (BT, C) f32
    # TODO(synk): if a profile ever shows the XLU reduce binding, move this sum
    # to the MXU (contract against a ones vector); the kernel is DMA-bound so
    # it is left on the XLU for now.

    # Two tiny FCs as batched GEMMs: (BT,C)x(C,h) -> relu -> (BT,h)x(h,C).
    h = jax.lax.dot_general(pooled, w1_ref[...],
                            (((1,), (1,)), ((), ())),
                            preferred_element_type=jnp.float32)       # (BT, hidden)
    h = jnp.maximum(h, 0.0)
    y = jax.lax.dot_general(h, w2_ref[...],
                            (((1,), (1,)), ((), ())),
                            preferred_element_type=jnp.float32)       # (BT, C)
    y = jax.nn.sigmoid(y)

    # Channel-wise rescale in the input's native dtype.
    o_ref[...] = x * y.astype(x.dtype)[:, :, None]


def se_pool_fc_kernel(x_ref, w1_ref, w2_ref, y_ref, acc_ref, *, hw, hwt, inv_hw):
    """Fallback pass 1: spatially-tiled pooled sum, FCs applied at the last tile.

    x_ref: (1, C, HWT)   y_ref: (1, 1, C) f32   acc_ref: (1, C) f32 scratch
    """
    s = pl.program_id(1)

    @pl.when(s == 0)
    def _():
        acc_ref[...] = jnp.zeros_like(acc_ref)

    x = x_ref[...]                                                    # (1, C, HWT)
    # Mask out lanes past the true HW (last spatial tile may overhang).
    lane = jax.lax.broadcasted_iota(jnp.int32, x.shape, 2) + s * hwt
    xm = jnp.where(lane < hw, x, jnp.zeros_like(x))
    acc_ref[...] += jnp.sum(xm, axis=-1, dtype=jnp.float32)           # (1, C)

    @pl.when(s == pl.num_programs(1) - 1)
    def _():
        pooled = acc_ref[...] * inv_hw                                # (1, C)
        h = jax.lax.dot_general(pooled, w1_ref[...],
                                (((1,), (1,)), ((), ())),
                                preferred_element_type=jnp.float32)   # (1, hidden)
        h = jnp.maximum(h, 0.0)
        y = jax.lax.dot_general(h, w2_ref[...],
                                (((1,), (1,)), ((), ())),
                                preferred_element_type=jnp.float32)   # (1, C)
        y_ref[...] = jax.nn.sigmoid(y)[:, None, :]                    # (1, 1, C)


def se_scale_kernel(x_ref, y_ref, o_ref):
    """Fallback pass 2: spatially-tiled channel rescale.

    x_ref/o_ref: (1, C, HWT)   y_ref: (1, 1, C) f32
    """
    scale = y_ref[...][:, 0, :, None]                                 # (1, C, 1) f32
    o_ref[...] = x_ref[...] * scale.astype(x_ref.dtype)


# ----------------------------------------------------------------------------
# Tiling / VMEM policy
# ----------------------------------------------------------------------------

def _chip_policy():
    """(vmem_capacity, two_tensorcores, target_block_bytes, vmem_clamp)."""
    vmem_cap = None
    try:
        info = pltpu.get_tpu_info()
        cap = int(getattr(info, "vmem_capacity_bytes", 0))
        vmem_cap = cap if cap > 0 else None
    except Exception:
        vmem_cap = None
    if vmem_cap is None:
        vmem_cap = 64 << 20          # conservative default (v7x-class part)

    two_tc = vmem_cap < (96 << 20)   # 64 MiB/TC parts have 2 TensorCores
    if two_tc:
        # v7x: smaller blocks, leave headroom under the 64 MiB scoped cap.
        target_bytes = 5 << 20
        clamp = min(52 << 20, vmem_cap - (8 << 20))
    else:
        # v5e / v6e: 128 MiB VMEM, single TensorCore -> big resident blocks.
        target_bytes = 12 << 20
        clamp = min(100 << 20, vmem_cap - (16 << 20))
    return vmem_cap, two_tc, int(target_bytes), int(max(clamp, 16 << 20))


def _pick_batch_tile(B, bytes_per_sample, target_bytes, two_tc):
    """Largest divisor of B whose block fits target_bytes (grid policy per chip)."""
    divisors = [d for d in range(1, B + 1) if B % d == 0]
    fitting = [d for d in divisors if d * bytes_per_sample <= target_bytes] or [1]
    if two_tc:
        # 2 TensorCores share the grid: prefer an even grid >= 4 so each core
        # gets >= 2 steps of double-buffered pipelining.
        good = [d for d in fitting if (B // d) >= 4 and (B // d) % 2 == 0]
        if good:
            return max(good)
        ok = [d for d in fitting if (B // d) >= 2 and (B // d) % 2 == 0]
        if ok:
            return max(ok)
    return max(fitting)


def _pick_spatial_tile(C, HW, itemsize, block_budget):
    """Largest multiple-of-128 spatial tile whose (1, C, HWT) block fits the budget."""
    per_lane = max(C * itemsize, 1)
    lanes = max(block_budget // per_lane, 128)
    hwt = max(128, (lanes // 128) * 128)
    if hwt >= HW:
        return int(HW)               # full extent: no overhang at all
    return int(hwt)


_HAS_BUFFERED = hasattr(pl, "Buffered")


def _resident_spec(block_shape, index_map):
    """Spec for weights: constant block index -> single-buffer if supported."""
    if _HAS_BUFFERED:
        try:
            return pl.BlockSpec(block_shape, index_map,
                                pipeline_mode=pl.Buffered(1))
        except TypeError:
            pass
    return pl.BlockSpec(block_shape, index_map)


# ----------------------------------------------------------------------------
# Wrappers
# ----------------------------------------------------------------------------

def _se_forward_two_pass(x_flat, w1, w2, *, hwt, vmem_limit):
    """Large-activation fallback: pool+FC pass, then a spatially tiled rescale."""
    B, C, HW = x_flat.shape
    hidden = w1.shape[0]
    S = pl.cdiv(HW, hwt)

    pool_kernel = functools.partial(se_pool_fc_kernel,
                                    hw=HW, hwt=hwt, inv_hw=float(1.0 / HW))
    y = pl.pallas_call(
        pool_kernel,
        out_shape=jax.ShapeDtypeStruct((B, 1, C), jnp.float32),
        grid_spec=pltpu.PrefetchScalarGridSpec(
            num_scalar_prefetch=0,
            grid=(B, S),
            in_specs=[
                pl.BlockSpec((1, C, hwt), lambda b, s: (b, 0, s)),
                _resident_spec((hidden, C), lambda b, s: (0, 0)),
                _resident_spec((C, hidden), lambda b, s: (0, 0)),
            ],
            out_specs=pl.BlockSpec((1, 1, C), lambda b, s: (b, 0, 0)),
            scratch_shapes=[pltpu.VMEM((1, C), jnp.float32)],
        ),
        compiler_params=pltpu.CompilerParams(
            dimension_semantics=("parallel", "arbitrary"),
            vmem_limit_bytes=vmem_limit,
        ),
    )(x_flat, w1, w2)

    out_flat = pl.pallas_call(
        se_scale_kernel,
        out_shape=jax.ShapeDtypeStruct((B, C, HW), x_flat.dtype),
        grid_spec=pltpu.PrefetchScalarGridSpec(
            num_scalar_prefetch=0,
            grid=(B, S),
            in_specs=[
                pl.BlockSpec((1, C, hwt), lambda b, s: (b, 0, s)),
                pl.BlockSpec((1, 1, C), lambda b, s: (b, 0, 0)),
            ],
            out_specs=pl.BlockSpec((1, C, hwt), lambda b, s: (b, 0, s)),
        ),
        compiler_params=pltpu.CompilerParams(
            dimension_semantics=("parallel", "parallel"),
            vmem_limit_bytes=vmem_limit,
        ),
    )(x_flat, y)
    return out_flat


def se_forward(x, w1, w2, *, force_two_pass=False, spatial_tile=None):
    """x: (B, C, H, W); w1: (C//r, C); w2: (C, C//r)."""
    B, C, H, W = x.shape
    HW = H * W
    hidden = w1.shape[0]
    itemsize = jnp.dtype(x.dtype).itemsize

    # Metadata-only reshape (contiguous): no padding, no extra HBM pass.
    x_flat = x.reshape(B, C, HW)

    _, two_tc, target_bytes, clamp = _chip_policy()

    weight_bytes = (w1.size + w2.size) * jnp.dtype(w1.dtype).itemsize
    wbuf = 1 if _HAS_BUFFERED else 2
    slack = 2 << 20
    # x block is double-buffered on both the in and out side -> 4 copies.
    max_block_bytes = max((clamp - wbuf * weight_bytes - slack) // 4, 128 * 1024)
    bytes_per_sample = C * HW * itemsize

    if force_two_pass or bytes_per_sample > max_block_bytes:
        # One sample does not fit double-buffered: spatially tiled two-pass path.
        hwt = (int(spatial_tile) if spatial_tile is not None
               else _pick_spatial_tile(C, HW, itemsize, max_block_bytes))
        blk = C * hwt * itemsize
        vmem_needed = 4 * blk + wbuf * weight_bytes + slack
        vmem_limit = int(min(max(vmem_needed, 16 << 20), clamp))
        out_flat = _se_forward_two_pass(x_flat, w1, w2, hwt=hwt,
                                        vmem_limit=vmem_limit)
        return out_flat.reshape(B, C, H, W)

    # Single-pass path: BT samples per grid step, full (C, HW) extents per block.
    eff_target = min(max(target_bytes, bytes_per_sample), max_block_bytes)
    BT = _pick_batch_tile(B, bytes_per_sample, eff_target, two_tc)
    grid = (B // BT,)

    block_bytes = BT * bytes_per_sample
    vmem_needed = 4 * block_bytes + wbuf * weight_bytes + slack
    vmem_limit = int(min(max(vmem_needed, 16 << 20), clamp))

    cost = pl.CostEstimate(
        flops=2 * B * C * HW + 4 * B * C * hidden,
        transcendentals=B * C,
        bytes_accessed=2 * B * C * HW * itemsize + int(weight_bytes),
    )

    kernel = functools.partial(se_kernel, inv_hw=float(1.0 / HW))

    out_flat = pl.pallas_call(
        kernel,
        out_shape=jax.ShapeDtypeStruct((B, C, HW), x.dtype),
        grid_spec=pltpu.PrefetchScalarGridSpec(
            num_scalar_prefetch=0,
            grid=grid,
            in_specs=[
                pl.BlockSpec((BT, C, HW), lambda b: (b, 0, 0)),   # BT samples/step
                _resident_spec((hidden, C), lambda b: (0, 0)),    # W1, single-buffered
                _resident_spec((C, hidden), lambda b: (0, 0)),    # W2, single-buffered
            ],
            out_specs=pl.BlockSpec((BT, C, HW), lambda b: (b, 0, 0)),
        ),
        compiler_params=pltpu.CompilerParams(
            dimension_semantics=("parallel",),
            vmem_limit_bytes=vmem_limit,
        ),
        cost_estimate=cost,
    )(x_flat, w1, w2)

    return out_flat.reshape(B, C, H, W)


def se_reference(x, w1, w2):
    """Pure-JAX reference matching the PyTorch forward exactly."""
    pooled = jnp.mean(x, axis=(2, 3))                  # (B, C)
    h = jnp.maximum(pooled @ w1.T, 0.0)                # (B, C//r)
    y = jax.nn.sigmoid(h @ w2.T)                       # (B, C)
    return x * y[:, :, None, None]


if __name__ == "__main__":
    key = jax.random.PRNGKey(0)
    kx, k1, k2, kx2, k3, k4 = jax.random.split(key, 6)

    # ---- Main single-pass path: 14x14 spatial (NOT a multiple of 128) exercises
    # the unpadded full-extent blocks; B=4 exercises the batch-tiling policy.
    B, C, H, W = 4, 32, 14, 14
    ratio = 16
    hidden = C // ratio

    x = jax.random.normal(kx, (B, C, H, W), dtype=jnp.float32)
    bound1 = 1.0 / (C ** 0.5)
    bound2 = 1.0 / (hidden ** 0.5)
    w1 = jax.random.uniform(k1, (hidden, C), jnp.float32, -bound1, bound1)  # l1.weight
    w2 = jax.random.uniform(k2, (C, hidden), jnp.float32, -bound2, bound2)  # l2.weight

    out = se_forward(x, w1, w2)
    jax.block_until_ready(out)
    ref = se_reference(x, w1, w2)
    assert out.shape == (B, C, H, W)
    assert jnp.allclose(out, ref, atol=1e-5, rtol=1e-5), "single-pass mismatch"

    # ---- Forced two-pass (large-activation) fallback path: HW=400 with a 128-lane
    # spatial tile gives 4 spatial steps including a ragged masked tail.
    B2, C2, H2, W2 = 2, 16, 20, 20
    hidden2 = C2 // 4
    x2 = jax.random.normal(kx2, (B2, C2, H2, W2), dtype=jnp.float32)
    b1 = 1.0 / (C2 ** 0.5)
    b2 = 1.0 / (hidden2 ** 0.5)
    w1b = jax.random.uniform(k3, (hidden2, C2), jnp.float32, -b1, b1)
    w2b = jax.random.uniform(k4, (C2, hidden2), jnp.float32, -b2, b2)

    out2 = se_forward(x2, w1b, w2b, force_two_pass=True, spatial_tile=128)
    jax.block_until_ready(out2)
    ref2 = se_reference(x2, w1b, w2b)
    assert out2.shape == (B2, C2, H2, W2)
    assert jnp.allclose(out2, ref2, atol=1e-5, rtol=1e-5), "two-pass mismatch"

    print("KERNEL_OK")
</pallas_src>

<mosaic_0001>
module attributes {stable_mosaic.version = 11 : i64} {
  func.func @se_kernel(%arg0: i32, %arg1: memref<1x32x196xf32, #tpu.memory_space<vmem>>, %arg2: memref<2x32xf32, #tpu.memory_space<vmem>>, %arg3: memref<32x2xf32, #tpu.memory_space<vmem>>, %arg4: memref<1x32x196xf32, #tpu.memory_space<vmem>>) attributes {dimension_semantics = [#tpu.dimension_semantics<parallel>], iteration_bounds = array<i64: 4>, scalar_prefetch = 0 : i64, scratch_operands = 0 : i64, tpu.core_type = #tpu.core_type<tc>, window_params = [{transform_indices = @transform_0, window_bounds = array<i64: 1, 32, 196>}, {pipeline_mode = #tpu.pipeline_mode<synchronous>, transform_indices = @transform_1, window_bounds = array<i64: 2, 32>}, {pipeline_mode = #tpu.pipeline_mode<synchronous>, transform_indices = @transform_2, window_bounds = array<i64: 32, 2>}, {transform_indices = @transform_3, window_bounds = array<i64: 1, 32, 196>}]} {
    %c0 = arith.constant 0 : index
    %c0_0 = arith.constant 0 : index
    %c0_1 = arith.constant 0 : index
    %0 = vector.load %arg1[%c0, %c0_0, %c0_1] : memref<1x32x196xf32, #tpu.memory_space<vmem>>, vector<1x32x196xf32>
    %cst = arith.constant dense<0.000000e+00> : vector<1x32xf32>
    %1 = vector.multi_reduction <add>, %0, %cst [2] : vector<1x32x196xf32> to vector<1x32xf32>
    %cst_2 = arith.constant 0.00510204071 : f32
    %2 = vector.broadcast %cst_2 : f32 to vector<1x32xf32>
    %3 = arith.mulf %1, %2 : vector<1x32xf32>
    %c0_3 = arith.constant 0 : index
    %c0_4 = arith.constant 0 : index
    %4 = vector.load %arg2[%c0_3, %c0_4] : memref<2x32xf32, #tpu.memory_space<vmem>>, vector<2x32xf32>
    %cst_5 = arith.constant dense<0.000000e+00> : vector<1x2xf32>
    %5 = tpu.matmul %3, %4, %cst_5 {dimension_numbers = #tpu.dot_dimension_numbers<[1], [1], [0], [0], [0, 0, 1, 0], [], []>} : vector<1x32xf32>, vector<2x32xf32>, vector<1x2xf32> -> vector<1x2xf32>
    %cst_6 = arith.constant 0.000000e+00 : f32
    %6 = vector.broadcast %cst_6 : f32 to vector<1x2xf32>
    %7 = arith.maximumf %5, %6 : vector<1x2xf32>
    %c0_7 = arith.constant 0 : index
    %c0_8 = arith.constant 0 : index
    %8 = vector.load %arg3[%c0_7, %c0_8] : memref<32x2xf32, #tpu.memory_space<vmem>>, vector<32x2xf32>
    %cst_9 = arith.constant dense<0.000000e+00> : vector<1x32xf32>
    %9 = tpu.matmul %7, %8, %cst_9 {dimension_numbers = #tpu.dot_dimension_numbers<[1], [1], [0], [0], [0, 0, 1, 0], [], []>} : vector<1x2xf32>, vector<32x2xf32>, vector<1x32xf32> -> vector<1x32xf32>
    %10 = arith.negf %9 : vector<1x32xf32>
    %11 = math.exp %10 : vector<1x32xf32>
    %cst_10 = arith.constant 1.000000e+00 : f32
    %12 = vector.broadcast %cst_10 : f32 to vector<1x32xf32>
    %13 = arith.addf %12, %11 : vector<1x32xf32>
    %14 = arith.divf %12, %13 : vector<1x32xf32>
    %15 = vector.shape_cast %14 : vector<1x32xf32> to vector<1x32x1xf32>
    %16 = vector.broadcast %15 : vector<1x32x1xf32> to vector<1x32x196xf32>
    %17 = arith.mulf %0, %16 : vector<1x32x196xf32>
    %c0_11 = arith.constant 0 : index
    %c0_12 = arith.constant 0 : index
    %c0_13 = arith.constant 0 : index
    %18 = vector.load %arg4[%c0_11, %c0_12, %c0_13] : memref<1x32x196xf32, #tpu.memory_space<vmem>>, vector<1x32x196xf32>
    tpu.vector_store %arg4[%c0_11, %c0_12, %c0_13], %17 {strides = array<i32>} : memref<1x32x196xf32, #tpu.memory_space<vmem>>, vector<1x32x196xf32>,
    return
  }
  func.func @transform_0(%arg0: i32) -> (i32, i32, i32) {
    %c0_i32 = arith.constant 0 : i32
    %c0_i32_0 = arith.constant 0 : i32
    %c0_i32_1 = arith.constant 0 : i32
    return %arg0, %c0_i32, %c0_i32_0 : i32, i32, i32
  }
  func.func @transform_1(%arg0: i32) -> (i32, i32) {
    %c0_i32 = arith.constant 0 : i32
    %c0_i32_0 = arith.constant 0 : i32
    %c0_i32_1 = arith.constant 0 : i32
    return %c0_i32, %c0_i32_0 : i32, i32
  }
  func.func @transform_2(%arg0: i32) -> (i32, i32) {
    %c0_i32 = arith.constant 0 : i32
    %c0_i32_0 = arith.constant 0 : i32
    %c0_i32_1 = arith.constant 0 : i32
    return %c0_i32, %c0_i32_0 : i32, i32
  }
  func.func @transform_3(%arg0: i32) -> (i32, i32, i32) {
    %c0_i32 = arith.constant 0 : i32
    %c0_i32_0 = arith.constant 0 : i32
    %c0_i32_1 = arith.constant 0 : i32
    return %arg0, %c0_i32, %c0_i32_0 : i32, i32, i32
  }
}

</mosaic_0001>

<llo_original>
// kernel: tpu_custom_call.1
$region0: #{tpu_custom_call.1}
  #allocation0 [shape = 'u32[]', space=smem, size = 0x4, offset = 0x4, fixed_abs, tag = 'smem constant byte address 0x4 - core index']
  #allocation1 [shape = 'u32[144,128]{1,0:T(1,128)}', space=vmem, size = 0x12000, scoped, tag = 'internal scratch']
  %s0 = inlined_call_operand.hbm [shape: f32[4,32,196], index: 0, kind: input, shape index: {}]
  %s1 = inlined_call_operand.vmem [shape: f32[2,32], index: 1, kind: input, shape index: {}]
  %s2 = inlined_call_operand.vmem [shape: f32[32,2], index: 2, kind: input, shape index: {}]
  %s3 = inlined_call_operand.hbm [shape: f32[4,32,196], index: 3, kind: output, shape index: {}]
  %s4 = sld [smem:[#allocation0]]
  $region49: #{tpu_custom_call.1} parent=0
    _
  %s6 = ssub.s32 1, %s4
  %s7 = scalar_select 0, %s6, %s4
  $region1: #{tpu_custom_call.1} parent=0
    #allocation2 [shape = 'u8[65536]{0}', space=vmem, size = 0x10000, scoped, tag = 'input window, operand 0']
    #allocation3 [shape = 's32[2]{0}', space=sflag, size = 0x8, scoped, tag = 'scoped memory for tpu_custom_call.1']
    #allocation4 [shape = 's32[2]{0}', space=sflag, size = 0x8, scoped, tag = 'scoped memory for tpu_custom_call.1']
    #allocation5 [shape = 'u8[65536]{0}', space=vmem, size = 0x10000, scoped, tag = 'output window, operand 0']
    %8 = vsyncpa [#allocation3], 0
    %s9 = scalar_lea.sflag [#allocation3], 1
    %10 = vsyncpa %s9, 0
    %11 = vsyncpa [#allocation4], 0
    %s12 = scalar_lea.sflag [#allocation4], 1
    %13 = vsyncpa %s12, 0
    loop: start=0, step=1, limit=6
    $region2: #{tpu_custom_call.1} parent=1 // loop_pre_header
      _
    $region3: #{tpu_custom_call.1} parent=1 // loop_header
      %s15 = sphi 0, %s19
      %p16 = scmp.ge.s32.totalorder %s15, 6
      %s25 = sphi 0, %s27
      %s28 = sphi 0, %s25
      %s29 = sphi 0, %s28
      %s45 = sphi 0, %s29
      %s49 = sphi 0, %s49
      %s51 = sphi 0, %s49
      %s52 = sphi 0, %s51
      %s66 = sphi 0, %s52
      %s70 = sphi 0, %s70
      %s72 = sphi 0, %s70
      %s73 = sphi 0, %s72
      %s87 = sphi 0, %s73
      %s93 = sphi 0, %s95
      %s96 = sphi 0, %s93
      %s97 = sphi 0, %s96
      %s113 = sphi 0, %s97
    $region4: #{tpu_custom_call.1} parent=1 // loop_header_branch
      %18 = sbr.rel (%p16) target = $region8
    $region5: #{tpu_custom_call.1} parent=1 // loop_body
      %s20 = ssub.s32 %s15, 1
      %s21 = ssub.s32 %s15, 2
      %s22 = sadd.s32 %s15, 1
      %s23 = ssub.s32 %s15, %s22
      %p24 = scmp.eq.s32.totalorder %s23, 0
      %s26 = sadd.s32 %s25, 1
      %s27 = scalar_select %p24, %s25, %s26
      %p30 = pneg %p24
      %p31 = scmp.eq.s32.totalorder %s15, 3
      %p32 = por %p30, %p31
      %p33 = scmp.ne.s32.totalorder %s25, %s28
      %p34 = scmp.eq.s32.totalorder %s15, 0
      %p35 = por %p33, %p34
      %p36 = scmp.ne.s32.totalorder %s25, %s28
      %p37 = scmp.eq.s32.totalorder %s20, 3
      %p38 = por %p36, %p37
      %p39 = scmp.ne.s32.totalorder %s28, %s29
      %p40 = scmp.eq.s32.totalorder %s20, 0
      %p41 = por %p39, %p40
      %p42 = scmp.ne.s32.totalorder %s28, %s29
      %p43 = scmp.eq.s32.totalorder %s21, 3
      %p44 = por %p42, %p43
      %p46 = scmp.ne.s32.totalorder %s29, %s45
      %p47 = scmp.eq.s32.totalorder %s21, 0
      %p48 = por %p46, %p47
      %s50 = sadd.s32 %s49, 1
      %p53 = scmp.eq.s32.totalorder %s15, 3
      %p54 = scmp.ne.s32.totalorder %s49, %s51
      %p55 = scmp.eq.s32.totalorder %s15, 0
      %p56 = por %p54, %p55
      %p57 = scmp.ne.s32.totalorder %s49, %s51
      %p58 = scmp.eq.s32.totalorder %s20, 3
      %p59 = por %p57, %p58
      %p60 = scmp.ne.s32.totalorder %s51, %s52
      %p61 = scmp.eq.s32.totalorder %s20, 0
      %p62 = por %p60, %p61
      %p63 = scmp.ne.s32.totalorder %s51, %s52
      %p64 = scmp.eq.s32.totalorder %s21, 3
      %p65 = por %p63, %p64
      %p67 = scmp.ne.s32.totalorder %s52, %s66
      %p68 = scmp.eq.s32.totalorder %s21, 0
      %p69 = por %p67, %p68
      %s71 = sadd.s32 %s70, 1
      %p74 = scmp.eq.s32.totalorder %s15, 3
      %p75 = scmp.ne.s32.totalorder %s70, %s72
      %p76 = scmp.eq.s32.totalorder %s15, 0
      %p77 = por %p75, %p76
      %p78 = scmp.ne.s32.totalorder %s70, %s72
      %p79 = scmp.eq.s32.totalorder %s20, 3
      %p80 = por %p78, %p79
      %p81 = scmp.ne.s32.totalorder %s72, %s73
      %p82 = scmp.eq.s32.totalorder %s20, 0
      %p83 = por %p81, %p82
      %p84 = scmp.ne.s32.totalorder %s72, %s73
      %p85 = scmp.eq.s32.totalorder %s21, 3
      %p86 = por %p84, %p85
      %p88 = scmp.ne.s32.totalorder %s73, %s87
      %p89 = scmp.eq.s32.totalorder %s21, 0
      %p90 = por %p88, %p89
      %s91 = ssub.s32 %s15, %s22
      %p92 = scmp.eq.s32.totalorder %s91, 0
      %s94 = sadd.s32 %s93, 1
      %s95 = scalar_select %p92, %s93, %s94
      %p98 = pneg %p92
      %p99 = scmp.eq.s32.totalorder %s15, 3
      %p100 = por %p98, %p99
      %p101 = scmp.ne.s32.totalorder %s93, %s96
      %p102 = scmp.eq.s32.totalorder %s15, 0
      %p103 = por %p101, %p102
      %p104 = scmp.ne.s32.totalorder %s93, %s96
      %p105 = scmp.eq.s32.totalorder %s20, 3
      %p106 = por %p104, %p105
      %p107 = scmp.ne.s32.totalorder %s96, %s97
      %p108 = scmp.eq.s32.totalorder %s20, 0
      %p109 = por %p107, %p108
      %p110 = scmp.ne.s32.totalorder %s96, %s97
      %p111 = scmp.eq.s32.totalorder %s21, 3
      %p112 = por %p110, %p111
      %p114 = scmp.ne.s32.totalorder %s97, %s113
      %p115 = scmp.eq.s32.totalorder %s21, 0
      %p116 = por %p114, %p115
      %p117 = scmp.le.s32.totalorder 1, %s15
      %p118 = scmp.lt.s32.totalorder %s15, 5
      %p119 = pnand %p117, %p118
      %p120 = pneg %p119
      // Predicated region
      $region9: #{tpu_custom_call.1} parent=5 // pred_check
        _
      $region10: #{tpu_custom_call.1} parent=5 // pred_check_branch
        %122 = sbr.rel (%p119) target = $region12
      $region11: #{tpu_custom_call.1} parent=5 // pred_region
        %s123 = ssub.s32 %s15, 1
        // Predicated region
        $region13: #{tpu_custom_call.1} parent=11 // pred_check
          %p124 = pneg %p62
        $region14: #{tpu_custom_call.1} parent=11 // pred_check_branch
          %126 = sbr.rel (%p124) target = $region16
        $region15: #{tpu_custom_call.1} parent=11 // pred_region
          _
        $region16: #{tpu_custom_call.1} parent=11 // pred_fallthru
          _
        // Predicated region
        $region17: #{tpu_custom_call.1} parent=11 // pred_check
          %p127 = pneg %p83
        $region18: #{tpu_custom_call.1} parent=11 // pred_check_branch
          %129 = sbr.rel (%p127) target = $region20
        $region19: #{tpu_custom_call.1} parent=11 // pred_region
          _
        $region20: #{tpu_custom_call.1} parent=11 // pred_fallthru
          _
      $region12: #{tpu_custom_call.1} parent=5 // pred_fallthru
        _
      %p130 = scmp.lt.s32.totalorder %s15, 4
      // Predicated region
      $region21: #{tpu_custom_call.1} parent=5 // pred_check
        %p131 = pneg %p130
      $region22: #{tpu_custom_call.1} parent=5 // pred_check_branch
        %133 = sbr.rel (%p131) target = $region24
      $region23: #{tpu_custom_call.1} parent=5 // pred_region
        // Predicated region
        $region25: #{tpu_custom_call.1} parent=23 // pred_check
          %p134 = pneg %p35
        $region26: #{tpu_custom_call.1} parent=23 // pred_check_branch
          %136 = sbr.rel (%p134) target = $region28
        $region27: #{tpu_custom_call.1} parent=23 // pred_region
          %s137 = sand.u32 %s25, 1
          %s138 = scalar_lea.sflag [#allocation3], %s137
          %s139 = sand.u32 %s25, 1
          %s140 = smul.addr %s139, 64
          %s141 = scalar_lea.vmem [#allocation2], %s140
          %s143 = ssub.s32 1024, 1024
          %144 = vsyncadd %s138, %s143
          %s145 = smul.addr %s15, 8
          %s146 = smul.addr %s145, 128
          %s147 = scalar_lea.hbm %s0, %s146
          %s148 = sshll.u32 %s141, 4
          %s149 = int_to_ptr.vmem [resolvable:$true] %s148
          %154 = dma.hbm_to_vmem [thread:$0]  %s147, 1024, %s149, %s138, 256, 256, 16
        $region28: #{tpu_custom_call.1} parent=23 // pred_fallthru
          _
      $region24: #{tpu_custom_call.1} parent=5 // pred_fallthru
        _
      %p155 = scmp.le.s32.totalorder 1, %s15
      %p156 = scmp.lt.s32.totalorder %s15, 5
      %p157 = pnand %p155, %p156
      %p158 = pneg %p157
      // Predicated region
      $region29: #{tpu_custom_call.1} parent=5 // pred_check
        _
      $region30: #{tpu_custom_call.1} parent=5 // pred_check_branch
        %160 = sbr.rel (%p157) target = $region32
      $region31: #{tpu_custom_call.1} parent=5 // pred_region
        %s161 = ssub.s32 %s15, 1
        %s162 = sand.u32 %s28, 1
        %s163 = scalar_lea.sflag [#allocation3], %s162
        %s164 = sand.u32 %s28, 1
        %s165 = smul.addr %s164, 64
        %s166 = scalar_lea.vmem [#allocation2], %s165
        // Predicated region
        $region33: #{tpu_custom_call.1} parent=31 // pred_check
          %p167 = pneg %p41
        $region34: #{tpu_custom_call.1} parent=31 // pred_check_branch
          %169 = sbr.rel (%p167) target = $region36
        $region35: #{tpu_custom_call.1} parent=31 // pred_region
          %170 = dma.done %s163, 1024
        $region36: #{tpu_custom_call.1} parent=31 // pred_fallthru
          _
        %s171 = sand.u32 %s28, 1
        %s172 = scalar_lea.sflag [#allocation3], %s171
        %s173 = sand.u32 %s28, 1
        %s174 = smul.addr %s173, 64
        %s175 = scalar_lea.vmem [#allocation2], %s174
        %p176 = pneg %p41
        %p177 = pneg %p38
        %p178 = pneg %p62
        %p179 = pneg %p59
        %p180 = pneg %p83
        %p181 = pneg %p80
        %p182 = pneg %p109
        %p183 = pneg %p106
        %s184 = sand.u32 %s96, 1
        %s185 = scalar_lea.sflag [#allocation4], %s184
        %s186 = sand.u32 %s96, 1
        %s187 = smul.addr %s186, 64
        %s188 = scalar_lea.vmem [#allocation5], %s187
        %v189 = vld [vmem:[%s166] sm:$0xff]
        %v190 = vld [vmem:[%s166 + $0x8] sm:$0xff]
        %v191 = vld [vmem:[%s166 + $0x10] sm:$0xff]
        %v192 = vld [vmem:[%s166 + $0x18] sm:$0xff]
        %v193 = vld [vmem:[%s166 + $0x20] sm:$0xff]
        %v194 = vld [vmem:[%s166 + $0x28] sm:$0xff]
        %v195 = vld [vmem:[%s166 + $0x30] sm:$0xff]
        %v196 = vld [vmem:[%s166 + $0x38] sm:$0xff]
        %vm197 = vcmask 556032
        %v198 = vsel %vm197, %v190, 0.0
        %v199 = vadd.f32 %v189, %v198
        %200 = vadd.xlane.f32.xlu0 %v199
        %v201 = vpop.xlane.xlu0 %200
        %v202 = vsel %vm197, %v192, 0.0
        %v203 = vadd.f32 %v191, %v202
        %204 = vadd.xlane.f32.xlu0 %v203
        %v205 = vpop.xlane.xlu0 %204
        %v206 = vsel %vm197, %v194, 0.0
        %v207 = vadd.f32 %v193, %v206
        %208 = vadd.xlane.f32.xlu0 %v207
        %v209 = vpop.xlane.xlu0 %208
        %v210 = vsel %vm197, %v196, 0.0
        %v211 = vadd.f32 %v195, %v210
        %212 = vadd.xlane.f32.xlu0 %v211
        %v213 = vpop.xlane.xlu0 %212
        %v214 = vmul.f32 %v201, 0.0051020407
        %v215 = vmul.f32 %v205, 0.0051020407
        %v216 = vmul.f32 %v209, 0.0051020407
        %v217 = vmul.f32 %v213, 0.0051020407
        %v218 = vld [vmem:[%s1] sm:$0x3]
        %v223 = vlaneseq
        %v224 = vand.u32 %v223, 127
        %v225 = vlaneseq
        %v226 = vshrl.u32 %v225, 7
        %v227 = vsub.s32 %v224, %v226
        %v228 = vrot.slane %v214, %v227
        %v229 = vadd.s32 %v224, 4294967288
        %v230 = vlaneseq
        %v231 = vshrl.u32 %v230, 7
        %v232 = vsub.s32 %v229, %v231
        %v233 = vrot.slane %v215, %v232
        %vm234 = vcmask 130112
        %v235 = vsel %vm234, %v233, %v228
        %v236 = vadd.s32 %v224, 4294967280
        %v237 = vlaneseq
        %v238 = vshrl.u32 %v237, 7
        %v239 = vsub.s32 %v236, %v238
        %v240 = vrot.slane %v216, %v239
        %vm241 = vcmask 195712
        %v242 = vsel %vm241, %v240, %v235
        %v243 = vadd.s32 %v224, 4294967272
        %v244 = vlaneseq
        %v245 = vshrl.u32 %v244, 7
        %v246 = vsub.s32 %v243, %v245
        %v247 = vrot.slane %v217, %v246
        %vm248 = vcmask 261312
        %v249 = vsel %vm248, %v247, %v242
        %vm250 = vcmask 261120
        %v251 = vsel %vm250, %v249, 0
        %v254 = vsel %vm250, %v218, 0
        %256 = vmatprep.subr.mxu0 0.0
        %257 = vmatpush1.xpose.msra.mxu0 %v254
        %258 = vmatprep.subr.mxu0 0.0
        %259 = vmatpush1.xpose.msra.mxu0 0.0
        %260 = vmatprep.subr.mxu0 0.0
        %261 = vmatpush1.xpose.msra.mxu0 0.0
        %262 = vmatprep.subr.mxu0 0.0
        %263 = vmatpush1.xpose.msra.mxu0 0.0
        %264 = vmatprep.subr.mxu0 0.0
        %265 = vmatpush1.xpose.msra.mxu0 0.0
        %266 = vmatprep.subr.mxu0 0.0
        %267 = vmatpush1.xpose.msra.mxu0 0.0
        %268 = vmatprep.subr.mxu0 0.0
        %269 = vmatpush1.xpose.msra.mxu0 0.0
        %270 = vmatprep.subr.mxu0 0.0
        %271 = vmatpush1.xpose.msra.mxu0 0.0
        %272 = vmatprep.subr.mxu0 0.0
        %273 = vmatpush1.xpose.msra.mxu0 0.0
        %274 = vmatprep.subr.mxu0 0.0
        %275 = vmatpush1.xpose.msra.mxu0 0.0
        %276 = vmatprep.subr.mxu0 0.0
        %277 = vmatpush1.xpose.msra.mxu0 0.0
        %278 = vmatprep.subr.mxu0 0.0
        %279 = vmatpush1.xpose.msra.mxu0 0.0
        %280 = vmatprep.subr.mxu0 0.0
        %281 = vmatpush1.xpose.msra.mxu0 0.0
        %282 = vmatprep.subr.mxu0 0.0
        %283 = vmatpush1.xpose.msra.mxu0 0.0
        %284 = vmatprep.subr.mxu0 0.0
        %285 = vmatpush1.xpose.msra.mxu0 0.0
        %286 = vmatprep.subr.mxu0 0.0
        %287 = vmatpush1.xpose.msra.mxu0 0.0
        %288 = vmatprep.subr.mxu0 0.0
        %289 = vmatpush1.xpose.msra.mxu0 0.0
        %290 = vmatprep.subr.mxu0 0.0
        %291 = vmatpush1.xpose.msra.mxu0 0.0
        %292 = vmatprep.subr.mxu0 0.0
        %293 = vmatpush1.xpose.msra.mxu0 0.0
        %294 = vmatprep.subr.mxu0 0.0
        %295 = vmatpush1.xpose.msra.mxu0 0.0
        %296 = vmatprep.subr.mxu0 0.0
        %297 = vmatpush1.xpose.msra.mxu0 0.0
        %298 = vmatprep.subr.mxu0 0.0
        %299 = vmatpush1.xpose.msra.mxu0 0.0
        %300 = vmatprep.subr.mxu0 0.0
        %301 = vmatpush1.xpose.msra.mxu0 0.0
        %302 = vmatprep.subr.mxu0 0.0
        %303 = vmatpush1.xpose.msra.mxu0 0.0
        %304 = vmatprep.subr.mxu0 0.0
        %305 = vmatpush1.xpose.msra.mxu0 0.0
        %306 = vmatprep.subr.mxu0 0.0
        %307 = vmatpush1.xpose.msra.mxu0 0.0
        %308 = vmatprep.subr.mxu0 0.0
        %309 = vmatpush1.xpose.msra.mxu0 0.0
        %310 = vmatprep.subr.mxu0 0.0
        %311 = vmatpush1.xpose.msra.mxu0 0.0
        %312 = vmatprep.subr.mxu0 0.0
        %313 = vmatpush1.xpose.msra.mxu0 0.0
        %314 = vmatprep.subr.mxu0 0.0
        %315 = vmatpush1.xpose.msra.mxu0 0.0
        %316 = vmatprep.subr.mxu0 0.0
        %317 = vmatpush1.xpose.msra.mxu0 0.0
        %318 = vmatprep.subr.mxu0 0.0
        %319 = vmatpush1.xpose.msra.mxu0 0.0
        %320 = vmatprep.mubr.f32.mxu0 0.0
        %321 = vmatmul.mubr.f32.gmra.mrb[0].mxu0 %v251
        %v322 = vpop.f32.mrb[0].mxu0
        %v323 = vadd.f32 0.0, %v322
        %v324 = vpop.f32.mrb[0].mxu0
        %325 = vdwg.mxu0
        %v326 = vmax.f32 %v323, 0.0
        %v327 = vld [vmem:[%s2] sm:$0xff]
        %v328 = vld [vmem:[%s2 + $0x8] sm:$0xff]
        %v329 = vld [vmem:[%s2 + $0x10] sm:$0xff]
        %v330 = vld [vmem:[%s2 + $0x18] sm:$0xff]
        %vm331 = vcmask 15360
        %v333 = vsel %vm331, %v326, 0
        %v336 = vsel %vm331, %v327, 0
        %v339 = vsel %vm331, %v328, 0
        %v342 = vsel %vm331, %v329, 0
        %v345 = vsel %vm331, %v330, 0
        %347 = vmatprep.subr.mxu0 0.0
        %348 = vmatpush1.xpose.msra.mxu0 %v336
        %349 = vmatprep.subr.mxu0 0.0
        %350 = vmatpush1.xpose.msra.mxu0 %v339
        %351 = vmatprep.subr.mxu0 0.0
        %352 = vmatpush1.xpose.msra.mxu0 %v342
        %353 = vmatprep.subr.mxu0 0.0
        %354 = vmatpush1.xpose.msra.mxu0 %v345
        %355 = vmatprep.subr.mxu0 0.0
        %356 = vmatpush1.xpose.msra.mxu0 0.0
        %357 = vmatprep.subr.mxu0 0.0
        %358 = vmatpush1.xpose.msra.mxu0 0.0
        %359 = vmatprep.subr.mxu0 0.0
        %360 = vmatpush1.xpose.msra.mxu0 0.0
        %361 = vmatprep.subr.mxu0 0.0
        %362 = vmatpush1.xpose.msra.mxu0 0.0
        %363 = vmatprep.subr.mxu0 0.0
        %364 = vmatpush1.xpose.msra.mxu0 0.0
        %365 = vmatprep.subr.mxu0 0.0
        %366 = vmatpush1.xpose.msra.mxu0 0.0
        %367 = vmatprep.subr.mxu0 0.0
        %368 = vmatpush1.xpose.msra.mxu0 0.0
        %369 = vmatprep.subr.mxu0 0.0
        %370 = vmatpush1.xpose.msra.mxu0 0.0
        %371 = vmatprep.subr.mxu0 0.0
        %372 = vmatpush1.xpose.msra.mxu0 0.0
        %373 = vmatprep.subr.mxu0 0.0
        %374 = vmatpush1.xpose.msra.mxu0 0.0
        %375 = vmatprep.subr.mxu0 0.0
        %376 = vmatpush1.xpose.msra.mxu0 0.0
        %377 = vmatprep.subr.mxu0 0.0
        %378 = vmatpush1.xpose.msra.mxu0 0.0
        %379 = vmatprep.subr.mxu0 0.0
        %380 = vmatpush1.xpose.msra.mxu0 0.0
        %381 = vmatprep.subr.mxu0 0.0
        %382 = vmatpush1.xpose.msra.mxu0 0.0
        %383 = vmatprep.subr.mxu0 0.0
        %384 = vmatpush1.xpose.msra.mxu0 0.0
        %385 = vmatprep.subr.mxu0 0.0
        %386 = vmatpush1.xpose.msra.mxu0 0.0
        %387 = vmatprep.subr.mxu0 0.0
        %388 = vmatpush1.xpose.msra.mxu0 0.0
        %389 = vmatprep.subr.mxu0 0.0
        %390 = vmatpush1.xpose.msra.mxu0 0.0
        %391 = vmatprep.subr.mxu0 0.0
        %392 = vmatpush1.xpose.msra.mxu0 0.0
        %393 = vmatprep.subr.mxu0 0.0
        %394 = vmatpush1.xpose.msra.mxu0 0.0
        %395 = vmatprep.subr.mxu0 0.0
        %396 = vmatpush1.xpose.msra.mxu0 0.0
        %397 = vmatprep.subr.mxu0 0.0
        %398 = vmatpush1.xpose.msra.mxu0 0.0
        %399 = vmatprep.subr.mxu0 0.0
        %400 = vmatpush1.xpose.msra.mxu0 0.0
        %401 = vmatprep.subr.mxu0 0.0
        %402 = vmatpush1.xpose.msra.mxu0 0.0
        %403 = vmatprep.subr.mxu0 0.0
        %404 = vmatpush1.xpose.msra.mxu0 0.0
        %405 = vmatprep.subr.mxu0 0.0
        %406 = vmatpush1.xpose.msra.mxu0 0.0
        %407 = vmatprep.subr.mxu0 0.0
        %408 = vmatpush1.xpose.msra.mxu0 0.0
        %409 = vmatprep.subr.mxu0 0.0
        %410 = vmatpush1.xpose.msra.mxu0 0.0
        %411 = vmatprep.mubr.f32.mxu0 0.0
        %412 = vmatmul.mubr.f32.gmra.mrb[0].mxu0 %v333
        %v413 = vpop.f32.mrb[0].mxu0
        %v414 = vadd.f32 0.0, %v413
        %v415 = vpop.f32.mrb[0].mxu0
        %416 = vdwg.mxu0
        %v417 = vxor.u32 %v414, 2147483648
        %v418 = vmul.f32 %v417, 1.442695
        %v419 = vpow.pop %v418
        %v420 = vadd.f32 %v419, 1.0
        %v421 = vrcp.pop %v420
        %v422 = vmul.f32 1.0, %v421
        %v423 = vlaneseq
        %v424 = vshrl.u32 %v423, 7
        %v425 = vsub.s32 0, %v424
        %v426 = vrot.slane %v422, %v425
        %428 = vbcast.lane.b32.xlu0 %v426, 256
        %v429 = vpop.permute.xlu0 %428
        %s431 = sor.u32 256, 8
        %432 = vbcast.lane.b32.xlu0 %v426, %s431
        %v433 = vpop.permute.xlu0 %432
        %s435 = sor.u32 256, 16
        %436 = vbcast.lane.b32.xlu0 %v426, %s435
        %v437 = vpop.permute.xlu0 %436
        %s439 = sor.u32 256, 24
        %440 = vbcast.lane.b32.xlu0 %v426, %s439
        %v441 = vpop.permute.xlu0 %440
        %v442 = vmul.f32 %v189, %v429
        %v443 = vmul.f32 %v190, %v429
        %v444 = vmul.f32 %v191, %v433
        %v445 = vmul.f32 %v192, %v433
        %v446 = vmul.f32 %v193, %v437
        %v447 = vmul.f32 %v194, %v437
        %v448 = vmul.f32 %v195, %v441
        %v449 = vmul.f32 %v196, %v441
        %450 = vst [vmem:[%s188] sm:$0xff] %v442
        %451 = vst.msk [vmem:[%s188 + $0x8] sm:$0xff] %vm197, %v443
        %452 = vst [vmem:[%s188 + $0x10] sm:$0xff] %v444
        %453 = vst.msk [vmem:[%s188 + $0x18] sm:$0xff] %vm197, %v445
        %454 = vst [vmem:[%s188 + $0x20] sm:$0xff] %v446
        %455 = vst.msk [vmem:[%s188 + $0x28] sm:$0xff] %vm197, %v447
        %456 = vst [vmem:[%s188 + $0x30] sm:$0xff] %v448
        %457 = vst.msk [vmem:[%s188 + $0x38] sm:$0xff] %vm197, %v449
        %s458 = sand.u32 %s96, 1
        %s459 = scalar_lea.sflag [#allocation4], %s458
        %s460 = sand.u32 %s96, 1
        %s461 = smul.addr %s460, 64
        %s462 = scalar_lea.vmem [#allocation5], %s461
        // Predicated region
        $region37: #{tpu_custom_call.1} parent=31 // pred_check
          %p463 = pneg %p106
        $region38: #{tpu_custom_call.1} parent=31 // pred_check_branch
          %465 = sbr.rel (%p463) target = $region40
        $region39: #{tpu_custom_call.1} parent=31 // pred_region
          %s467 = ssub.s32 1024, 1024
          %468 = vsyncadd %s459, %s467
          %s469 = smul.addr %s20, 8
          %s470 = smul.addr %s469, 128
          %s471 = scalar_lea.hbm %s3, %s470
          %s472 = sshll.u32 %s462, 4
          %s473 = int_to_ptr.vmem [resolvable:$true] %s472
          %478 = dma.vmem_to_hbm [thread:$0]  %s473, 1024, %s471, %s459, 256, 256, 16
        $region40: #{tpu_custom_call.1} parent=31 // pred_fallthru
          _
      $region32: #{tpu_custom_call.1} parent=5 // pred_fallthru
        _
      %p479 = scmp.le.s32.totalorder 2, %s15
      // Predicated region
      $region41: #{tpu_custom_call.1} parent=5 // pred_check
        %p480 = pneg %p479
      $region42: #{tpu_custom_call.1} parent=5 // pred_check_branch
        %482 = sbr.rel (%p480) target = $region44
      $region43: #{tpu_custom_call.1} parent=5 // pred_region
        %s483 = ssub.s32 %s15, 2
        // Predicated region
        $region45: #{tpu_custom_call.1} parent=43 // pred_check
          %p484 = pneg %p112
        $region46: #{tpu_custom_call.1} parent=43 // pred_check_branch
          %486 = sbr.rel (%p484) target = $region48
        $region47: #{tpu_custom_call.1} parent=43 // pred_region
          %s487 = sand.u32 %s97, 1
          %s488 = scalar_lea.sflag [#allocation4], %s487
          %s489 = sand.u32 %s97, 1
          %s490 = smul.addr %s489, 64
          %s491 = scalar_lea.vmem [#allocation5], %s490
          %492 = dma.done %s488, 1024
        $region48: #{tpu_custom_call.1} parent=43 // pred_fallthru
          _
      $region44: #{tpu_custom_call.1} parent=5 // pred_fallthru
        _
    $region6: #{tpu_custom_call.1} parent=1 // loop_footer
      %s19 = sadd.s32 1, %s15
    $region7: #{tpu_custom_call.1} parent=1 // loop_footer_branch
      %14 = sbr.rel target = $region3
    $region8: #{tpu_custom_call.1} parent=1 // loop_exit
      _
    %493 = vsyncpa [#allocation3], 1
    %s494 = scalar_lea.sflag [#allocation3], 1
    %495 = vsyncpa %s494, 1
    %496 = vsyncpa [#allocation4], 1
    %s497 = scalar_lea.sflag [#allocation4], 1
    %498 = vsyncpa %s497, 1

</llo_original>
